<compile_context>
chip_gen: v5e
topology: v5e:2x2
jax: 0.10.0
libtpu: 0.0.40
codegen_flags: <defaults>
</compile_context>

<pallas_src>
import functools

import jax
import jax.numpy as jnp
import numpy as np
from jax.experimental import pallas as pl
from jax.experimental.pallas import tpu as pltpu

LN_EPS = 1e-5
LANE = 128
MAX_TILE_B = 1024


def _round_up(x, m):
    return ((x + m - 1) // m) * m


def _cdiv(a, b):
    return (a + b - 1) // b


def _vec_layout(h0, h1, hh, out_w):
    """Segment layout (name, width) of the packed [1, V] bias/LN/mask vector."""
    return [("b1", h0), ("g1", h0), ("be1", h0),
            ("b2", h1), ("g2", h1), ("be2", h1),
            ("bh1", hh), ("gh", hh), ("beh", hh),
            ("m0", hh), ("m1", hh), ("m0s", hh), ("m1s", hh),
            ("bout", out_w)]


def _choose_batch_tiling(batch):
    """Pick (tile_b, b_pad).

    * tile_b is a multiple of 8 sublanes, capped at MAX_TILE_B rows.
    * >= 2 grid steps whenever the batch allows it, so the "parallel" batch
      axis can be split across both v7x TensorCores (harmless ~0.35us extra
      step on single-TC v5e/v6e).
    * b_pad is rounded up to tile_b chosen near b/steps, minimizing waste.
    """
    b8 = _round_up(batch, 8)
    if b8 < 16:
        return b8, b8
    steps = max(2, _cdiv(b8, MAX_TILE_B))
    tile_b = min(MAX_TILE_B, _round_up(_cdiv(b8, steps), 8))
    b_pad = _round_up(batch, tile_b)
    return tile_b, b_pad


# ----------------------------- kernel helpers -------------------------------
def _ln_full(y, g, b):
    """One-pass LayerNorm over all lanes (independent sum / sum-of-squares)."""
    inv_n = 1.0 / float(y.shape[-1])
    mu = jnp.sum(y, axis=-1, keepdims=True) * inv_n
    q = jnp.sum(y * y, axis=-1, keepdims=True) * inv_n
    r = jax.lax.rsqrt(q - mu * mu + LN_EPS)
    return (y - mu) * r * g + b


def _ln_two_segments(y, g, b, m0, m1, m0s, m1s):
    """LayerNorm over two lane segments using precomputed (pre-scaled) masks.

    m0s/m1s are the segment masks scaled by 1/seg_dim; m0/m1 are unscaled.
    Padding lanes (mask 0 everywhere) come out as b (= 0 in the packed params).
    """
    yy = y * y
    mu0 = jnp.sum(y * m0s, axis=-1, keepdims=True)
    mu1 = jnp.sum(y * m1s, axis=-1, keepdims=True)
    q0 = jnp.sum(yy * m0s, axis=-1, keepdims=True)
    q1 = jnp.sum(yy * m1s, axis=-1, keepdims=True)
    r0 = jax.lax.rsqrt(q0 - mu0 * mu0 + LN_EPS)
    r1 = jax.lax.rsqrt(q1 - mu1 * mu1 + LN_EPS)
    mu = m0 * mu0 + m1 * mu1
    r = m0 * r0 + m1 * r1
    return (y - mu) * r * g + b


# --------------------------------- kernel -----------------------------------
def actor_critic_kernel(x_ref, w1_ref, w2_ref, wh1_ref, wh2_ref, vec_ref,
                        out_ref, *, offs):
    def seg(name):
        o, w = offs[name]
        return vec_ref[:, o:o + w]          # static, 128-aligned slice: free

    def mm(a, w_ref):
        # Cast the activation to the (possibly bf16) weight dtype only at the
        # MXU boundary; accumulate in f32.
        return jnp.dot(a.astype(w_ref.dtype), w_ref[...],
                       preferred_element_type=jnp.float32)

    x = x_ref[...].astype(jnp.float32)

    # ---- feature extractor ----
    y = mm(x, w1_ref) + seg("b1")
    h = jnp.maximum(_ln_full(y, seg("g1"), seg("be1")), 0.0)

    y = mm(h, w2_ref) + seg("b2")
    h = jnp.maximum(_ln_full(y, seg("g2"), seg("be2")), 0.0)

    # ---- fused actor|critic head hidden ([B, 2*H2] padded to 128 lanes) ----
    y = mm(h, wh1_ref) + seg("bh1")
    hh = jnp.maximum(
        _ln_two_segments(y, seg("gh"), seg("beh"),
                         seg("m0"), seg("m1"), seg("m0s"), seg("m1s")), 0.0)

    # ---- fused output projection: logits in lanes [0:A), value in lane A ----
    out_ref[...] = (mm(hh, wh2_ref) + seg("bout")).astype(out_ref.dtype)


# ------------------------------ host wrapper ---------------------------------
@functools.partial(jax.jit, static_argnames=("action_dim",))
def improved_actor_critic_forward(x, packed, action_dim):
    B, obs_dim = x.shape
    H0 = packed["w1"].shape[1]
    H1 = packed["w2"].shape[1]
    HH = packed["wh1"].shape[1]
    OUT_W = packed["wh2"].shape[1]

    layout = _vec_layout(H0, H1, HH, OUT_W)
    offs, o = {}, 0
    for name, w in layout:
        assert w % LANE == 0, f"vec segment {name} must be lane-aligned"
        offs[name] = (o, w)
        o += w
    V = o
    assert packed["vec"].shape == (1, V)
    assert action_dim + 1 <= OUT_W, "value lane must fit the packed output"

    tile_b, b_pad = _choose_batch_tiling(B)

    # Pad only the batch dim (no materialized 128-lane pad of x).
    x32 = x.astype(jnp.float32)
    if b_pad != B:
        x_in = jnp.concatenate(
            [x32, jnp.zeros((b_pad - B, obs_dim), jnp.float32)], axis=0)
    else:
        x_in = x32

    kernel = functools.partial(actor_critic_kernel, offs=offs)

    w_flops_k = obs_dim * H0 + H0 * H1 + H1 * HH + HH * OUT_W
    wbytes = packed["w1"].dtype.itemsize
    cost = pl.CostEstimate(
        flops=2 * b_pad * w_flops_k,
        transcendentals=4 * b_pad,                       # rsqrt per LN stage
        bytes_accessed=(b_pad * obs_dim * 4 + b_pad * OUT_W * 4
                        + w_flops_k * wbytes + V * 4))

    resident = lambda i: (0, 0)
    out = pl.pallas_call(
        kernel,
        out_shape=jax.ShapeDtypeStruct((b_pad, OUT_W), jnp.float32),
        grid=(b_pad // tile_b,),
        in_specs=[
            pl.BlockSpec((tile_b, obs_dim), lambda i: (i, 0)),
            pl.BlockSpec((obs_dim, H0), resident),
            pl.BlockSpec((H0, H1), resident),
            pl.BlockSpec((H1, HH), resident),
            pl.BlockSpec((HH, OUT_W), resident),
            pl.BlockSpec((1, V), resident),
        ],
        out_specs=pl.BlockSpec((tile_b, OUT_W), lambda i: (i, 0)),
        compiler_params=pltpu.CompilerParams(
            dimension_semantics=("parallel",)),
        cost_estimate=cost,
    )(x_in, packed["w1"], packed["w2"], packed["wh1"], packed["wh2"],
      packed["vec"])

    logits = out[:B, :action_dim]
    value = out[:B, action_dim:action_dim + 1]
    return logits, value


# --------------------------- parameter construction --------------------------
def _orthogonal(key, shape, gain):
    init = jax.nn.initializers.orthogonal(scale=gain)
    return init(key, shape, jnp.float32)


def make_params(key, obs_dim, hidden_layers, action_dim):
    h0, h1, h2 = hidden_layers
    gain = float(np.sqrt(2.0))
    ks = jax.random.split(key, 6)

    def lin(k, din, dout):
        return _orthogonal(k, (din, dout), gain), jnp.zeros((1, dout), jnp.float32)

    def ln(dim):
        return jnp.ones((1, dim), jnp.float32), jnp.zeros((1, dim), jnp.float32)

    w1, b1 = lin(ks[0], obs_dim, h0)
    g1, be1 = ln(h0)
    w2, b2 = lin(ks[1], h0, h1)
    g2, be2 = ln(h1)
    wa1, ba1 = lin(ks[2], h1, h2)
    ga, bea = ln(h2)
    wa2, ba2 = lin(ks[3], h2, action_dim)
    wc1, bc1 = lin(ks[4], h1, h2)
    gc, bec = ln(h2)
    wc2, bc2 = lin(ks[5], h2, 1)

    return dict(w1=w1, b1=b1, g1=g1, be1=be1,
                w2=w2, b2=b2, g2=g2, be2=be2,
                wa1=wa1, ba1=ba1, ga=ga, bea=bea, wa2=wa2, ba2=ba2,
                wc1=wc1, bc1=bc1, gc=gc, bec=bec, wc2=wc2, bc2=bc2)


def pack_params(params, obs_dim, hidden_layers, action_dim,
                use_bf16_matmul=False):
    """One-time repacking into lane-dense, fused kernel operands.

    If use_bf16_matmul is True, the four matmul weights are stored in bf16
    (v6e/v7x fast path); biases / LN params / masks always stay f32.
    """
    h0, h1, h2 = hidden_layers
    assert h0 % LANE == 0 and h1 % LANE == 0, "hidden widths must be lane-aligned"

    hh = _round_up(2 * h2, LANE)
    out_w = _round_up(action_dim + 1, LANE)
    assert action_dim + 1 <= out_w, "value lane must fit the packed output"

    wdt = jnp.bfloat16 if use_bf16_matmul else jnp.float32

    w1 = params["w1"].astype(wdt)                                 # (obs, h0)
    w2 = params["w2"].astype(wdt)                                 # (h0, h1)
    wh1 = (jnp.zeros((h1, hh), jnp.float32)
           .at[:, :2 * h2].set(jnp.concatenate([params["wa1"], params["wc1"]],
                                               axis=1))
           .astype(wdt))
    wh2 = (jnp.zeros((hh, out_w), jnp.float32)
           .at[:h2, :action_dim].set(params["wa2"])
           .at[h2:2 * h2, action_dim:action_dim + 1].set(params["wc2"])
           .astype(wdt))

    def pad_row(v, w):
        return jnp.zeros((1, w), jnp.float32).at[:, :v.shape[1]].set(v)

    # Precomputed two-segment LN masks (pre-scaled variants fold in 1/seg).
    lane_idx = np.arange(hh)
    m0 = (lane_idx < h2).astype(np.float32)
    m1 = ((lane_idx >= h2) & (lane_idx < 2 * h2)).astype(np.float32)

    segs = {
        "b1": params["b1"], "g1": params["g1"], "be1": params["be1"],
        "b2": params["b2"], "g2": params["g2"], "be2": params["be2"],
        "bh1": pad_row(jnp.concatenate([params["ba1"], params["bc1"]], axis=1), hh),
        "gh": pad_row(jnp.concatenate([params["ga"], params["gc"]], axis=1), hh),
        "beh": pad_row(jnp.concatenate([params["bea"], params["bec"]], axis=1), hh),
        "m0": jnp.asarray(m0).reshape(1, hh),
        "m1": jnp.asarray(m1).reshape(1, hh),
        "m0s": jnp.asarray(m0 / float(h2)).reshape(1, hh),
        "m1s": jnp.asarray(m1 / float(h2)).reshape(1, hh),
        "bout": (jnp.zeros((1, out_w), jnp.float32)
                 .at[:, :action_dim].set(params["ba2"])
                 .at[:, action_dim:action_dim + 1].set(params["bc2"])),
    }
    layout = _vec_layout(h0, h1, hh, out_w)
    for name, w in layout:
        assert w % LANE == 0, f"vec segment {name} must be lane-aligned"
        assert segs[name].shape == (1, w)
    vec = jnp.concatenate([segs[name].astype(jnp.float32) for name, _ in layout],
                          axis=1)

    return {"w1": w1, "w2": w2, "wh1": wh1, "wh2": wh2, "vec": vec}


# ------------------------------ pure-JAX reference ---------------------------
def reference_forward(x, p):
    def ln(y, g, b):
        mu = jnp.mean(y, axis=-1, keepdims=True)
        var = jnp.mean(jnp.square(y - mu), axis=-1, keepdims=True)
        return (y - mu) / jnp.sqrt(var + LN_EPS) * g + b

    h = jnp.maximum(ln(x @ p["w1"] + p["b1"], p["g1"], p["be1"]), 0.0)
    h = jnp.maximum(ln(h @ p["w2"] + p["b2"], p["g2"], p["be2"]), 0.0)
    a = jnp.maximum(ln(h @ p["wa1"] + p["ba1"], p["ga"], p["bea"]), 0.0)
    logits = a @ p["wa2"] + p["ba2"]
    c = jnp.maximum(ln(h @ p["wc1"] + p["bc1"], p["gc"], p["bec"]), 0.0)
    value = c @ p["wc2"] + p["bc2"]
    return logits, value


# ----------------------------------- main ------------------------------------
if __name__ == "__main__":
    obs_dim = 16
    action_dim = 8
    hidden_layers = [128, 128, 64]   # module default config
    batch = 2

    key = jax.random.PRNGKey(0)
    k_param, k_x = jax.random.split(key)
    params = make_params(k_param, obs_dim, hidden_layers, action_dim)
    x = jax.random.normal(k_x, (batch, obs_dim), jnp.float32)
    ref_logits, ref_value = reference_forward(x, params)

    # ---- f32 path: semantic check at tight tolerance ----
    packed = pack_params(params, obs_dim, hidden_layers, action_dim,
                         use_bf16_matmul=False)
    logits, value = improved_actor_critic_forward(x, packed,
                                                  action_dim=action_dim)
    jax.block_until_ready((logits, value))
    assert logits.shape == (batch, action_dim)
    assert value.shape == (batch, 1)
    np.testing.assert_allclose(np.asarray(logits), np.asarray(ref_logits),
                               rtol=1e-4, atol=1e-4)
    np.testing.assert_allclose(np.asarray(value), np.asarray(ref_value),
                               rtol=1e-4, atol=1e-4)

    # ---- bf16 matmul fast path (v6e/v7x lever): relaxed-tolerance sanity ----
    packed_bf16 = pack_params(params, obs_dim, hidden_layers, action_dim,
                              use_bf16_matmul=True)
    logits_b, value_b = improved_actor_critic_forward(x, packed_bf16,
                                                      action_dim=action_dim)
    jax.block_until_ready((logits_b, value_b))
    np.testing.assert_allclose(np.asarray(logits_b), np.asarray(ref_logits),
                               rtol=1e-1, atol=1e-1)
    np.testing.assert_allclose(np.asarray(value_b), np.asarray(ref_value),
                               rtol=1e-1, atol=1e-1)

    print("KERNEL_OK")
</pallas_src>

<mosaic_0001>
module attributes {stable_mosaic.version = 11 : i64} {
  func.func @actor_critic_kernel(%arg0: i32, %arg1: memref<8x16xf32, #tpu.memory_space<vmem>>, %arg2: memref<16x128xf32, #tpu.memory_space<vmem>>, %arg3: memref<128x128xf32, #tpu.memory_space<vmem>>, %arg4: memref<128x128xf32, #tpu.memory_space<vmem>>, %arg5: memref<128x128xf32, #tpu.memory_space<vmem>>, %arg6: memref<1x1792xf32, #tpu.memory_space<vmem>>, %arg7: memref<8x128xf32, #tpu.memory_space<vmem>>) attributes {dimension_semantics = [#tpu.dimension_semantics<parallel>], iteration_bounds = array<i64: 1>, scalar_prefetch = 0 : i64, scratch_operands = 0 : i64, tpu.core_type = #tpu.core_type<tc>, window_params = [{transform_indices = @transform_0, window_bounds = array<i64: 8, 16>}, {pipeline_mode = #tpu.pipeline_mode<synchronous>, transform_indices = @transform_1, window_bounds = array<i64: 16, 128>}, {pipeline_mode = #tpu.pipeline_mode<synchronous>, transform_indices = @transform_2, window_bounds = array<i64: 128, 128>}, {pipeline_mode = #tpu.pipeline_mode<synchronous>, transform_indices = @transform_3, window_bounds = array<i64: 128, 128>}, {pipeline_mode = #tpu.pipeline_mode<synchronous>, transform_indices = @transform_4, window_bounds = array<i64: 128, 128>}, {pipeline_mode = #tpu.pipeline_mode<synchronous>, transform_indices = @transform_5, window_bounds = array<i64: 1, 1792>}, {transform_indices = @transform_6, window_bounds = array<i64: 8, 128>}]} {
    %c0 = arith.constant 0 : index
    %c0_0 = arith.constant 0 : index
    %0 = vector.load %arg1[%c0, %c0_0] : memref<8x16xf32, #tpu.memory_space<vmem>>, vector<8x16xf32>
    %c0_1 = arith.constant 0 : index
    %c0_2 = arith.constant 0 : index
    %1 = vector.load %arg2[%c0_1, %c0_2] : memref<16x128xf32, #tpu.memory_space<vmem>>, vector<16x128xf32>
    %cst = arith.constant dense<0.000000e+00> : vector<8x128xf32>
    %2 = tpu.matmul %0, %1, %cst {dimension_numbers = #tpu.dot_dimension_numbers<[1], [0], [0], [1], [0, 0, 1, 1], [], []>} : vector<8x16xf32>, vector<16x128xf32>, vector<8x128xf32> -> vector<8x128xf32>
    %c0_3 = arith.constant 0 : index
    %c0_4 = arith.constant 0 : index
    %3 = vector.load %arg6[%c0_3, %c0_4] : memref<1x1792xf32, #tpu.memory_space<vmem>>, vector<1x128xf32>
    %4 = vector.broadcast %3 : vector<1x128xf32> to vector<8x128xf32>
    %5 = arith.addf %2, %4 : vector<8x128xf32>
    %c0_5 = arith.constant 0 : index
    %c128 = arith.constant 128 : index
    %6 = vector.load %arg6[%c0_5, %c128] : memref<1x1792xf32, #tpu.memory_space<vmem>>, vector<1x128xf32>
    %c0_6 = arith.constant 0 : index
    %c256 = arith.constant 256 : index
    %7 = vector.load %arg6[%c0_6, %c256] : memref<1x1792xf32, #tpu.memory_space<vmem>>, vector<1x128xf32>
    %cst_7 = arith.constant dense<0.000000e+00> : vector<8xf32>
    %8 = vector.multi_reduction <add>, %5, %cst_7 [1] : vector<8x128xf32> to vector<8xf32>
    %9 = vector.shape_cast %8 : vector<8xf32> to vector<8x1xf32>
    %cst_8 = arith.constant 7.812500e-03 : f32
    %10 = vector.broadcast %cst_8 : f32 to vector<8x1xf32>
    %11 = arith.mulf %9, %10 : vector<8x1xf32>
    %12 = arith.mulf %5, %5 : vector<8x128xf32>
    %cst_9 = arith.constant dense<0.000000e+00> : vector<8xf32>
    %13 = vector.multi_reduction <add>, %12, %cst_9 [1] : vector<8x128xf32> to vector<8xf32>
    %14 = vector.shape_cast %13 : vector<8xf32> to vector<8x1xf32>
    %cst_10 = arith.constant 7.812500e-03 : f32
    %15 = vector.broadcast %cst_10 : f32 to vector<8x1xf32>
    %16 = arith.mulf %14, %15 : vector<8x1xf32>
    %17 = arith.mulf %11, %11 : vector<8x1xf32>
    %18 = arith.subf %16, %17 : vector<8x1xf32>
    %cst_11 = arith.constant 9.99999974E-6 : f32
    %19 = vector.broadcast %cst_11 : f32 to vector<8x1xf32>
    %20 = arith.addf %18, %19 : vector<8x1xf32>
    %21 = math.rsqrt %20 : vector<8x1xf32>
    %22 = vector.broadcast %11 : vector<8x1xf32> to vector<8x128xf32>
    %23 = arith.subf %5, %22 : vector<8x128xf32>
    %24 = vector.broadcast %21 : vector<8x1xf32> to vector<8x128xf32>
    %25 = arith.mulf %23, %24 : vector<8x128xf32>
    %26 = vector.broadcast %6 : vector<1x128xf32> to vector<8x128xf32>
    %27 = arith.mulf %25, %26 : vector<8x128xf32>
    %28 = vector.broadcast %7 : vector<1x128xf32> to vector<8x128xf32>
    %29 = arith.addf %27, %28 : vector<8x128xf32>
    %cst_12 = arith.constant 0.000000e+00 : f32
    %30 = vector.broadcast %cst_12 : f32 to vector<8x128xf32>
    %31 = arith.maximumf %29, %30 : vector<8x128xf32>
    %c0_13 = arith.constant 0 : index
    %c0_14 = arith.constant 0 : index
    %32 = vector.load %arg3[%c0_13, %c0_14] : memref<128x128xf32, #tpu.memory_space<vmem>>, vector<128x128xf32>
    %cst_15 = arith.constant dense<0.000000e+00> : vector<8x128xf32>
    %33 = tpu.matmul %31, %32, %cst_15 {dimension_numbers = #tpu.dot_dimension_numbers<[1], [0], [0], [1], [0, 0, 1, 1], [], []>} : vector<8x128xf32>, vector<128x128xf32>, vector<8x128xf32> -> vector<8x128xf32>
    %c0_16 = arith.constant 0 : index
    %c384 = arith.constant 384 : index
    %34 = vector.load %arg6[%c0_16, %c384] : memref<1x1792xf32, #tpu.memory_space<vmem>>, vector<1x128xf32>
    %35 = vector.broadcast %34 : vector<1x128xf32> to vector<8x128xf32>
    %36 = arith.addf %33, %35 : vector<8x128xf32>
    %c0_17 = arith.constant 0 : index
    %c512 = arith.constant 512 : index
    %37 = vector.load %arg6[%c0_17, %c512] : memref<1x1792xf32, #tpu.memory_space<vmem>>, vector<1x128xf32>
    %c0_18 = arith.constant 0 : index
    %c640 = arith.constant 640 : index
    %38 = vector.load %arg6[%c0_18, %c640] : memref<1x1792xf32, #tpu.memory_space<vmem>>, vector<1x128xf32>
    %cst_19 = arith.constant dense<0.000000e+00> : vector<8xf32>
    %39 = vector.multi_reduction <add>, %36, %cst_19 [1] : vector<8x128xf32> to vector<8xf32>
    %40 = vector.shape_cast %39 : vector<8xf32> to vector<8x1xf32>
    %cst_20 = arith.constant 7.812500e-03 : f32
    %41 = vector.broadcast %cst_20 : f32 to vector<8x1xf32>
    %42 = arith.mulf %40, %41 : vector<8x1xf32>
    %43 = arith.mulf %36, %36 : vector<8x128xf32>
    %cst_21 = arith.constant dense<0.000000e+00> : vector<8xf32>
    %44 = vector.multi_reduction <add>, %43, %cst_21 [1] : vector<8x128xf32> to vector<8xf32>
    %45 = vector.shape_cast %44 : vector<8xf32> to vector<8x1xf32>
    %cst_22 = arith.constant 7.812500e-03 : f32
    %46 = vector.broadcast %cst_22 : f32 to vector<8x1xf32>
    %47 = arith.mulf %45, %46 : vector<8x1xf32>
    %48 = arith.mulf %42, %42 : vector<8x1xf32>
    %49 = arith.subf %47, %48 : vector<8x1xf32>
    %cst_23 = arith.constant 9.99999974E-6 : f32
    %50 = vector.broadcast %cst_23 : f32 to vector<8x1xf32>
    %51 = arith.addf %49, %50 : vector<8x1xf32>
    %52 = math.rsqrt %51 : vector<8x1xf32>
    %53 = vector.broadcast %42 : vector<8x1xf32> to vector<8x128xf32>
    %54 = arith.subf %36, %53 : vector<8x128xf32>
    %55 = vector.broadcast %52 : vector<8x1xf32> to vector<8x128xf32>
    %56 = arith.mulf %54, %55 : vector<8x128xf32>
    %57 = vector.broadcast %37 : vector<1x128xf32> to vector<8x128xf32>
    %58 = arith.mulf %56, %57 : vector<8x128xf32>
    %59 = vector.broadcast %38 : vector<1x128xf32> to vector<8x128xf32>
    %60 = arith.addf %58, %59 : vector<8x128xf32>
    %cst_24 = arith.constant 0.000000e+00 : f32
    %61 = vector.broadcast %cst_24 : f32 to vector<8x128xf32>
    %62 = arith.maximumf %60, %61 : vector<8x128xf32>
    %c0_25 = arith.constant 0 : index
    %c0_26 = arith.constant 0 : index
    %63 = vector.load %arg4[%c0_25, %c0_26] : memref<128x128xf32, #tpu.memory_space<vmem>>, vector<128x128xf32>
    %cst_27 = arith.constant dense<0.000000e+00> : vector<8x128xf32>
    %64 = tpu.matmul %62, %63, %cst_27 {dimension_numbers = #tpu.dot_dimension_numbers<[1], [0], [0], [1], [0, 0, 1, 1], [], []>} : vector<8x128xf32>, vector<128x128xf32>, vector<8x128xf32> -> vector<8x128xf32>
    %c0_28 = arith.constant 0 : index
    %c768 = arith.constant 768 : index
    %65 = vector.load %arg6[%c0_28, %c768] : memref<1x1792xf32, #tpu.memory_space<vmem>>, vector<1x128xf32>
    %66 = vector.broadcast %65 : vector<1x128xf32> to vector<8x128xf32>
    %67 = arith.addf %64, %66 : vector<8x128xf32>
    %c0_29 = arith.constant 0 : index
    %c896 = arith.constant 896 : index
    %68 = vector.load %arg6[%c0_29, %c896] : memref<1x1792xf32, #tpu.memory_space<vmem>>, vector<1x128xf32>
    %c0_30 = arith.constant 0 : index
    %c1024 = arith.constant 1024 : index
    %69 = vector.load %arg6[%c0_30, %c1024] : memref<1x1792xf32, #tpu.memory_space<vmem>>, vector<1x128xf32>
    %c0_31 = arith.constant 0 : index
    %c1152 = arith.constant 1152 : index
    %70 = vector.load %arg6[%c0_31, %c1152] : memref<1x1792xf32, #tpu.memory_space<vmem>>, vector<1x128xf32>
    %c0_32 = arith.constant 0 : index
    %c1280 = arith.constant 1280 : index
    %71 = vector.load %arg6[%c0_32, %c1280] : memref<1x1792xf32, #tpu.memory_space<vmem>>, vector<1x128xf32>
    %c0_33 = arith.constant 0 : index
    %c1408 = arith.constant 1408 : index
    %72 = vector.load %arg6[%c0_33, %c1408] : memref<1x1792xf32, #tpu.memory_space<vmem>>, vector<1x128xf32>
    %c0_34 = arith.constant 0 : index
    %c1536 = arith.constant 1536 : index
    %73 = vector.load %arg6[%c0_34, %c1536] : memref<1x1792xf32, #tpu.memory_space<vmem>>, vector<1x128xf32>
    %74 = arith.mulf %67, %67 : vector<8x128xf32>
    %75 = vector.broadcast %72 : vector<1x128xf32> to vector<8x128xf32>
    %76 = arith.mulf %67, %75 : vector<8x128xf32>
    %cst_35 = arith.constant dense<0.000000e+00> : vector<8xf32>
    %77 = vector.multi_reduction <add>, %76, %cst_35 [1] : vector<8x128xf32> to vector<8xf32>
    %78 = vector.shape_cast %77 : vector<8xf32> to vector<8x1xf32>
    %79 = vector.broadcast %73 : vector<1x128xf32> to vector<8x128xf32>
    %80 = arith.mulf %67, %79 : vector<8x128xf32>
    %cst_36 = arith.constant dense<0.000000e+00> : vector<8xf32>
    %81 = vector.multi_reduction <add>, %80, %cst_36 [1] : vector<8x128xf32> to vector<8xf32>
    %82 = vector.shape_cast %81 : vector<8xf32> to vector<8x1xf32>
    %83 = vector.broadcast %72 : vector<1x128xf32> to vector<8x128xf32>
    %84 = arith.mulf %74, %83 : vector<8x128xf32>
    %cst_37 = arith.constant dense<0.000000e+00> : vector<8xf32>
    %85 = vector.multi_reduction <add>, %84, %cst_37 [1] : vector<8x128xf32> to vector<8xf32>
    %86 = vector.shape_cast %85 : vector<8xf32> to vector<8x1xf32>
    %87 = vector.broadcast %73 : vector<1x128xf32> to vector<8x128xf32>
    %88 = arith.mulf %74, %87 : vector<8x128xf32>
    %cst_38 = arith.constant dense<0.000000e+00> : vector<8xf32>
    %89 = vector.multi_reduction <add>, %88, %cst_38 [1] : vector<8x128xf32> to vector<8xf32>
    %90 = vector.shape_cast %89 : vector<8xf32> to vector<8x1xf32>
    %91 = arith.mulf %78, %78 : vector<8x1xf32>
    %92 = arith.subf %86, %91 : vector<8x1xf32>
    %cst_39 = arith.constant 9.99999974E-6 : f32
    %93 = vector.broadcast %cst_39 : f32 to vector<8x1xf32>
    %94 = arith.addf %92, %93 : vector<8x1xf32>
    %95 = math.rsqrt %94 : vector<8x1xf32>
    %96 = arith.mulf %82, %82 : vector<8x1xf32>
    %97 = arith.subf %90, %96 : vector<8x1xf32>
    %cst_40 = arith.constant 9.99999974E-6 : f32
    %98 = vector.broadcast %cst_40 : f32 to vector<8x1xf32>
    %99 = arith.addf %97, %98 : vector<8x1xf32>
    %100 = math.rsqrt %99 : vector<8x1xf32>
    %101 = vector.broadcast %70 : vector<1x128xf32> to vector<8x128xf32>
    %102 = vector.broadcast %78 : vector<8x1xf32> to vector<8x128xf32>
    %103 = arith.mulf %101, %102 : vector<8x128xf32>
    %104 = vector.broadcast %71 : vector<1x128xf32> to vector<8x128xf32>
    %105 = vector.broadcast %82 : vector<8x1xf32> to vector<8x128xf32>
    %106 = arith.mulf %104, %105 : vector<8x128xf32>
    %107 = arith.addf %103, %106 : vector<8x128xf32>
    %108 = vector.broadcast %70 : vector<1x128xf32> to vector<8x128xf32>
    %109 = vector.broadcast %95 : vector<8x1xf32> to vector<8x128xf32>
    %110 = arith.mulf %108, %109 : vector<8x128xf32>
    %111 = vector.broadcast %71 : vector<1x128xf32> to vector<8x128xf32>
    %112 = vector.broadcast %100 : vector<8x1xf32> to vector<8x128xf32>
    %113 = arith.mulf %111, %112 : vector<8x128xf32>
    %114 = arith.addf %110, %113 : vector<8x128xf32>
    %115 = arith.subf %67, %107 : vector<8x128xf32>
    %116 = arith.mulf %115, %114 : vector<8x128xf32>
    %117 = vector.broadcast %68 : vector<1x128xf32> to vector<8x128xf32>
    %118 = arith.mulf %116, %117 : vector<8x128xf32>
    %119 = vector.broadcast %69 : vector<1x128xf32> to vector<8x128xf32>
    %120 = arith.addf %118, %119 : vector<8x128xf32>
    %cst_41 = arith.constant 0.000000e+00 : f32
    %121 = vector.broadcast %cst_41 : f32 to vector<8x128xf32>
    %122 = arith.maximumf %120, %121 : vector<8x128xf32>
    %c0_42 = arith.constant 0 : index
    %c0_43 = arith.constant 0 : index
    %123 = vector.load %arg5[%c0_42, %c0_43] : memref<128x128xf32, #tpu.memory_space<vmem>>, vector<128x128xf32>
    %cst_44 = arith.constant dense<0.000000e+00> : vector<8x128xf32>
    %124 = tpu.matmul %122, %123, %cst_44 {dimension_numbers = #tpu.dot_dimension_numbers<[1], [0], [0], [1], [0, 0, 1, 1], [], []>} : vector<8x128xf32>, vector<128x128xf32>, vector<8x128xf32> -> vector<8x128xf32>
    %c0_45 = arith.constant 0 : index
    %c1664 = arith.constant 1664 : index
    %125 = vector.load %arg6[%c0_45, %c1664] : memref<1x1792xf32, #tpu.memory_space<vmem>>, vector<1x128xf32>
    %126 = vector.broadcast %125 : vector<1x128xf32> to vector<8x128xf32>
    %127 = arith.addf %124, %126 : vector<8x128xf32>
    %c0_46 = arith.constant 0 : index
    %c0_47 = arith.constant 0 : index
    %128 = vector.load %arg7[%c0_46, %c0_47] : memref<8x128xf32, #tpu.memory_space<vmem>>, vector<8x128xf32>
    tpu.vector_store %arg7[%c0_46, %c0_47], %127 {strides = array<i32>} : memref<8x128xf32, #tpu.memory_space<vmem>>, vector<8x128xf32>,
    return
  }
  func.func @transform_0(%arg0: i32) -> (i32, i32) {
    %c0_i32 = arith.constant 0 : i32
    %c0_i32_0 = arith.constant 0 : i32
    return %arg0, %c0_i32 : i32, i32
  }
  func.func @transform_1(%arg0: i32) -> (i32, i32) {
    %c0_i32 = arith.constant 0 : i32
    %c0_i32_0 = arith.constant 0 : i32
    %c0_i32_1 = arith.constant 0 : i32
    return %c0_i32, %c0_i32_0 : i32, i32
  }
  func.func @transform_2(%arg0: i32) -> (i32, i32) {
    %c0_i32 = arith.constant 0 : i32
    %c0_i32_0 = arith.constant 0 : i32
    %c0_i32_1 = arith.constant 0 : i32
    return %c0_i32, %c0_i32_0 : i32, i32
  }
  func.func @transform_3(%arg0: i32) -> (i32, i32) {
    %c0_i32 = arith.constant 0 : i32
    %c0_i32_0 = arith.constant 0 : i32
    %c0_i32_1 = arith.constant 0 : i32
    return %c0_i32, %c0_i32_0 : i32, i32
  }
  func.func @transform_4(%arg0: i32) -> (i32, i32) {
    %c0_i32 = arith.constant 0 : i32
    %c0_i32_0 = arith.constant 0 : i32
    %c0_i32_1 = arith.constant 0 : i32
    return %c0_i32, %c0_i32_0 : i32, i32
  }
  func.func @transform_5(%arg0: i32) -> (i32, i32) {
    %c0_i32 = arith.constant 0 : i32
    %c0_i32_0 = arith.constant 0 : i32
    %c0_i32_1 = arith.constant 0 : i32
    return %c0_i32, %c0_i32_0 : i32, i32
  }
  func.func @transform_6(%arg0: i32) -> (i32, i32) {
    %c0_i32 = arith.constant 0 : i32
    %c0_i32_0 = arith.constant 0 : i32
    return %arg0, %c0_i32 : i32, i32
  }
}

</mosaic_0001>

<llo_original>
// kernel: improved_actor_critic_forward.1
$region0: #{improved_actor_critic_forward.1}
  #allocation0 [shape = 'u32[]', space=smem, size = 0x4, offset = 0x4, fixed_abs, tag = 'smem constant byte address 0x4 - core index']
  #allocation1 [shape = 'u32[72,128]{1,0:T(1,128)}', space=vmem, size = 0x9000, scoped, tag = 'internal scratch']
  %s0 = inlined_call_operand.vmem [shape: f32[8,16], index: 0, kind: input, shape index: {}]
  %s1 = inlined_call_operand.hbm [shape: f32[16,128], index: 1, kind: input, shape index: {}]
  %s2 = inlined_call_operand.hbm [shape: f32[128,128], index: 2, kind: input, shape index: {}]
  %s3 = inlined_call_operand.hbm [shape: f32[128,128], index: 3, kind: input, shape index: {}]
  %s4 = inlined_call_operand.hbm [shape: f32[128,128], index: 4, kind: input, shape index: {}]
  %s5 = inlined_call_operand.hbm [shape: f32[1,1792], index: 5, kind: input, shape index: {}]
  %s6 = inlined_call_operand.vmem [shape: f32[8,128], index: 6, kind: output, shape index: {}]
  %s7 = sld [smem:[#allocation0]]
  $region54: #{improved_actor_critic_forward.1} parent=0
    _
  %s9 = ssub.s32 1, %s7
  %s10 = scalar_select 0, %s9, %s7
  $region1: #{improved_actor_critic_forward.1} parent=0
    #allocation2 [shape = 'u8[8192]{0}', space=vmem, size = 0x2000, scoped, tag = 'input window, operand 1, single buffered']
    #allocation3 [shape = 's32[1]{0}', space=sflag, size = 0x4, scoped, tag = 'scoped memory for improved_actor_critic_forward.1']
    #allocation4 [shape = 'u8[65536]{0}', space=vmem, size = 0x10000, scoped, tag = 'input window, operand 2, single buffered']
    #allocation5 [shape = 's32[1]{0}', space=sflag, size = 0x4, scoped, tag = 'scoped memory for improved_actor_critic_forward.1']
    #allocation6 [shape = 'u8[65536]{0}', space=vmem, size = 0x10000, scoped, tag = 'input window, operand 3, single buffered']
    #allocation7 [shape = 'u8[65536]{0}', space=vmem, size = 0x10000, scoped, tag = 'input window, operand 4, single buffered']
    #allocation8 [shape = 's32[1]{0}', space=sflag, size = 0x4, scoped, tag = 'scoped memory for improved_actor_critic_forward.1']
    #allocation9 [shape = 'u8[7168]{0}', space=vmem, size = 0x1c00, scoped, tag = 'input window, operand 5, single buffered']
    %11 = vsyncpa [#allocation3], 0
    %12 = vsyncpa [#allocation5], 0
    %13 = vsyncpa [#allocation8], 0
    // Predicated region
    $region2: #{improved_actor_critic_forward.1} parent=1 // pred_check
      _
    $region3: #{improved_actor_critic_forward.1} parent=1 // pred_check_branch
      %15 = sbr.rel (0) target = $region5
    $region4: #{improved_actor_critic_forward.1} parent=1 // pred_region
      _
    $region5: #{improved_actor_critic_forward.1} parent=1 // pred_fallthru
      _
    // Predicated region
    $region6: #{improved_actor_critic_forward.1} parent=1 // pred_check
      _
    $region7: #{improved_actor_critic_forward.1} parent=1 // pred_check_branch
      %17 = sbr.rel (0) target = $region9
    $region8: #{improved_actor_critic_forward.1} parent=1 // pred_region
      %19 = vsyncadd [#allocation3], 0
      %s20 = sshll.u32 %s1, 4
      %s21 = int_to_ptr.hbm [resolvable:$true] %s20
      %s22 = sshll.u32 [#allocation2], 4
      %s23 = int_to_ptr.vmem [resolvable:$true] %s22
      %28 = dma.hbm_to_vmem [thread:$0]  %s21, 256, %s23, [#allocation3], 128, 128, 8
    $region9: #{improved_actor_critic_forward.1} parent=1 // pred_fallthru
      _
    // Predicated region
    $region10: #{improved_actor_critic_forward.1} parent=1 // pred_check
      _
    $region11: #{improved_actor_critic_forward.1} parent=1 // pred_check_branch
      %30 = sbr.rel (0) target = $region13
    $region12: #{improved_actor_critic_forward.1} parent=1 // pred_region
      %32 = vsyncadd [#allocation5], 0
      %s33 = sshll.u32 %s2, 4
      %s34 = int_to_ptr.hbm [resolvable:$true] %s33
      %s35 = sshll.u32 [#allocation4], 4
      %s36 = int_to_ptr.vmem [resolvable:$true] %s35
      %41 = dma.hbm_to_vmem [thread:$0]  %s34, 2048, %s36, [#allocation5], 128, 128, 8
    $region13: #{improved_actor_critic_forward.1} parent=1 // pred_fallthru
      _
    // Predicated region
    $region14: #{improved_actor_critic_forward.1} parent=1 // pred_check
      _
    $region15: #{improved_actor_critic_forward.1} parent=1 // pred_check_branch
      %43 = sbr.rel (0) target = $region17
    $region16: #{improved_actor_critic_forward.1} parent=1 // pred_region
      %45 = vsyncadd [#allocation5], 0
      %s46 = sshll.u32 %s3, 4
      %s47 = int_to_ptr.hbm [resolvable:$true] %s46
      %s48 = sshll.u32 [#allocation6], 4
      %s49 = int_to_ptr.vmem [resolvable:$true] %s48
      %54 = dma.hbm_to_vmem [thread:$0]  %s47, 2048, %s49, [#allocation5], 128, 128, 8
    $region17: #{improved_actor_critic_forward.1} parent=1 // pred_fallthru
      _
    // Predicated region
    $region18: #{improved_actor_critic_forward.1} parent=1 // pred_check
      _
    $region19: #{improved_actor_critic_forward.1} parent=1 // pred_check_branch
      %56 = sbr.rel (0) target = $region21
    $region20: #{improved_actor_critic_forward.1} parent=1 // pred_region
      %58 = vsyncadd [#allocation8], 0
      %s59 = sshll.u32 %s4, 4
      %s60 = int_to_ptr.hbm [resolvable:$true] %s59
      %s61 = sshll.u32 [#allocation7], 4
      %s62 = int_to_ptr.vmem [resolvable:$true] %s61
      %67 = dma.hbm_to_vmem [thread:$0]  %s60, 2048, %s62, [#allocation8], 128, 128, 8
    $region21: #{improved_actor_critic_forward.1} parent=1 // pred_fallthru
      _
    // Predicated region
    $region22: #{improved_actor_critic_forward.1} parent=1 // pred_check
      _
    $region23: #{improved_actor_critic_forward.1} parent=1 // pred_check_branch
      %69 = sbr.rel (0) target = $region25
    $region24: #{improved_actor_critic_forward.1} parent=1 // pred_region
      %71 = vsyncadd [#allocation8], 0
      %s73 = sshll.u32 %s5, 4
      %s74 = int_to_ptr.hbm [resolvable:$true] %s73
      %s75 = sshll.u32 [#allocation9], 4
      %s76 = int_to_ptr.vmem [resolvable:$true] %s75
      %78 = dma.hbm_to_vmem [thread:$0]  %s74, 224, %s76, [#allocation8]
    $region25: #{improved_actor_critic_forward.1} parent=1 // pred_fallthru
      _
    // Predicated region
    $region26: #{improved_actor_critic_forward.1} parent=1 // pred_check
      _
    $region27: #{improved_actor_critic_forward.1} parent=1 // pred_check_branch
      %80 = sbr.rel (0) target = $region29
    $region28: #{improved_actor_critic_forward.1} parent=1 // pred_region
      %82 = dma.done [#allocation3], 256
    $region29: #{improved_actor_critic_forward.1} parent=1 // pred_fallthru
      _
    // Predicated region
    $region30: #{improved_actor_critic_forward.1} parent=1 // pred_check
      _
    $region31: #{improved_actor_critic_forward.1} parent=1 // pred_check_branch
      %84 = sbr.rel (0) target = $region33
    $region32: #{improved_actor_critic_forward.1} parent=1 // pred_region
      %86 = dma.done [#allocation5], 2048
    $region33: #{improved_actor_critic_forward.1} parent=1 // pred_fallthru
      _
    // Predicated region
    $region34: #{improved_actor_critic_forward.1} parent=1 // pred_check
      _
    $region35: #{improved_actor_critic_forward.1} parent=1 // pred_check_branch
      %88 = sbr.rel (0) target = $region37
    $region36: #{improved_actor_critic_forward.1} parent=1 // pred_region
      %90 = dma.done [#allocation5], 2048
    $region37: #{improved_actor_critic_forward.1} parent=1 // pred_fallthru
      _
    // Predicated region
    $region38: #{improved_actor_critic_forward.1} parent=1 // pred_check
      _
    $region39: #{improved_actor_critic_forward.1} parent=1 // pred_check_branch
      %92 = sbr.rel (0) target = $region41
    $region40: #{improved_actor_critic_forward.1} parent=1 // pred_region
      %94 = dma.done [#allocation8], 2048
    $region41: #{improved_actor_critic_forward.1} parent=1 // pred_fallthru
      _
    // Predicated region
    $region42: #{improved_actor_critic_forward.1} parent=1 // pred_check
      _
    $region43: #{improved_actor_critic_forward.1} parent=1 // pred_check_branch
      %96 = sbr.rel (0) target = $region45
    $region44: #{improved_actor_critic_forward.1} parent=1 // pred_region
      %98 = dma.done [#allocation8], 224
    $region45: #{improved_actor_critic_forward.1} parent=1 // pred_fallthru
      _
    %v99 = vld [vmem:[%s0] sm:$0xff]
    %v100 = vld [vmem:[#allocation2] sm:$0xff]
    %v101 = vld [vmem:[#allocation2 + $0x8] sm:$0xff]
    %v102 = vld [vmem:[#allocation9] sm:$0x1]
    %v104 = vperm.slane %v102, 0
    %vm106 = vcmask 130048
    %v108 = vsel %vm106, %v99, 0
    %110 = vmatpush.msra.mxu0 0.0
    %111 = vmatpush.msra.mxu0 0.0
    %112 = vmatpush.msra.mxu0 0.0
    %113 = vmatpush.msra.mxu0 0.0
    %114 = vmatpush.msra.mxu0 0.0
    %115 = vmatpush.msra.mxu0 0.0
    %116 = vmatpush.msra.mxu0 0.0
    %117 = vmatpush.msra.mxu0 0.0
    %118 = vmatpush.msra.mxu0 0.0
    %119 = vmatpush.msra.mxu0 0.0
    %120 = vmatpush.msra.mxu0 0.0
    %121 = vmatpush.msra.mxu0 0.0
    %122 = vmatpush.msra.mxu0 0.0
    %123 = vmatpush.msra.mxu0 0.0
    %124 = vmatpush.msra.mxu0 %v101
    %125 = vmatpush.msra.mxu0 %v100
    %126 = vmatmul.f32.gmra.mxu0 %v108
    %v127 = vpop.f32.mrf.mxu0
    %v128 = vadd.f32 %v104, %v127
    %129 = vdwg.mxu0
    %v130 = vld [vmem:[#allocation9 + $0x1] sm:$0x1]
    %v131 = vld [vmem:[#allocation9 + $0x2] sm:$0x1]
    %132 = vadd.xlane.f32.xlu0 %v128
    %v133 = vpop.xlane.xlu0 %132
    %v134 = vmul.f32 %v133, 0.0078125
    %v135 = vmul.f32 %v128, %v128
    %136 = vadd.xlane.f32.xlu0 %v135
    %v137 = vpop.xlane.xlu0 %136
    %v138 = vmul.f32 %v137, 0.0078125
    %v139 = vmul.f32 %v134, %v134
    %v140 = vsub.f32 %v138, %v139
    %v141 = vadd.f32 %v140, 1e-05
    %v142 = vrsqrt.pop %v141
    %v143 = vmul.f32 %v142, %v141
    %v144 = vmul.f32 %v143, %v142
    %v145 = vmul.f32 0.5, %v144
    %v146 = vsub.f32 1.5, %v145
    %v147 = vmul.f32 %v142, %v146
    %vm148 = vweird.f32 %v141
    %vm149 = vweird.f32 %v142
    %vm150 = vmor %vm148, %vm149
    %v151 = vsel %vm150, %v142, %v147
    %v152 = vsub.f32 %v128, %v134
    %v153 = vmul.f32 %v152, %v151
    %v155 = vperm.slane %v130, 0
    %v157 = vmul.f32 %v153, %v155
    %v159 = vperm.slane %v131, 0
    %v161 = vadd.f32 %v157, %v159
    %v162 = vmax.f32 %v161, 0.0
    %v163 = vld [vmem:[#allocation4] sm:$0xff]
    %v164 = vld [vmem:[#allocation4 + $0x8] sm:$0xff]
    %v165 = vld [vmem:[#allocation4 + $0x10] sm:$0xff]
    %v166 = vld [vmem:[#allocation4 + $0x18] sm:$0xff]
    %v167 = vld [vmem:[#allocation4 + $0x20] sm:$0xff]
    %v168 = vld [vmem:[#allocation4 + $0x28] sm:$0xff]
    %v169 = vld [vmem:[#allocation4 + $0x30] sm:$0xff]
    %v170 = vld [vmem:[#allocation4 + $0x38] sm:$0xff]
    %v171 = vld [vmem:[#allocation4 + $0x40] sm:$0xff]
    %v172 = vld [vmem:[#allocation4 + $0x48] sm:$0xff]
    %v173 = vld [vmem:[#allocation4 + $0x50] sm:$0xff]
    %v174 = vld [vmem:[#allocation4 + $0x58] sm:$0xff]
    %v175 = vld [vmem:[#allocation4 + $0x60] sm:$0xff]
    %v176 = vld [vmem:[#allocation4 + $0x68] sm:$0xff]
    %v177 = vld [vmem:[#allocation4 + $0x70] sm:$0xff]
    %v178 = vld [vmem:[#allocation4 + $0x78] sm:$0xff]
    %v179 = vld [vmem:[#allocation9 + $0x3] sm:$0x1]
    %v181 = vperm.slane %v179, 0
    %183 = vmatpush.msra.mxu0 %v178
    %184 = vmatpush.msra.mxu0 %v177
    %185 = vmatpush.msra.mxu0 %v176
    %186 = vmatpush.msra.mxu0 %v175
    %187 = vmatpush.msra.mxu0 %v174
    %188 = vmatpush.msra.mxu0 %v173
    %189 = vmatpush.msra.mxu0 %v172
    %190 = vmatpush.msra.mxu0 %v171
    %191 = vmatpush.msra.mxu0 %v170
    %192 = vmatpush.msra.mxu0 %v169
    %193 = vmatpush.msra.mxu0 %v168
    %194 = vmatpush.msra.mxu0 %v167
    %195 = vmatpush.msra.mxu0 %v166
    %196 = vmatpush.msra.mxu0 %v165
    %197 = vmatpush.msra.mxu0 %v164
    %198 = vmatpush.msra.mxu0 %v163
    %199 = vmatmul.f32.gmra.mxu0 %v162
    %v200 = vpop.f32.mrf.mxu0
    %v201 = vadd.f32 %v181, %v200
    %202 = vdwg.mxu0
    %v203 = vld [vmem:[#allocation9 + $0x4] sm:$0x1]
    %v204 = vld [vmem:[#allocation9 + $0x5] sm:$0x1]
    %205 = vadd.xlane.f32.xlu0 %v201
    %v206 = vpop.xlane.xlu0 %205
    %v207 = vmul.f32 %v206, 0.0078125
    %v208 = vmul.f32 %v201, %v201
    %209 = vadd.xlane.f32.xlu0 %v208
    %v210 = vpop.xlane.xlu0 %209
    %v211 = vmul.f32 %v210, 0.0078125
    %v212 = vmul.f32 %v207, %v207
    %v213 = vsub.f32 %v211, %v212
    %v214 = vadd.f32 %v213, 1e-05
    %v215 = vrsqrt.pop %v214
    %v216 = vmul.f32 %v215, %v214
    %v217 = vmul.f32 %v216, %v215
    %v218 = vmul.f32 0.5, %v217
    %v219 = vsub.f32 1.5, %v218
    %v220 = vmul.f32 %v215, %v219
    %vm221 = vweird.f32 %v214
    %vm222 = vweird.f32 %v215
    %vm223 = vmor %vm221, %vm222
    %v224 = vsel %vm223, %v215, %v220
    %v225 = vsub.f32 %v201, %v207
    %v226 = vmul.f32 %v225, %v224
    %v228 = vperm.slane %v203, 0
    %v230 = vmul.f32 %v226, %v228
    %v232 = vperm.slane %v204, 0
    %v234 = vadd.f32 %v230, %v232
    %v235 = vmax.f32 %v234, 0.0
    %v236 = vld [vmem:[#allocation6] sm:$0xff]
    %v237 = vld [vmem:[#allocation6 + $0x8] sm:$0xff]
    %v238 = vld [vmem:[#allocation6 + $0x10] sm:$0xff]
    %v239 = vld [vmem:[#allocation6 + $0x18] sm:$0xff]
    %v240 = vld [vmem:[#allocation6 + $0x20] sm:$0xff]
    %v241 = vld [vmem:[#allocation6 + $0x28] sm:$0xff]
    %v242 = vld [vmem:[#allocation6 + $0x30] sm:$0xff]
    %v243 = vld [vmem:[#allocation6 + $0x38] sm:$0xff]
    %v244 = vld [vmem:[#allocation6 + $0x40] sm:$0xff]
    %v245 = vld [vmem:[#allocation6 + $0x48] sm:$0xff]
    %v246 = vld [vmem:[#allocation6 + $0x50] sm:$0xff]
    %v247 = vld [vmem:[#allocation6 + $0x58] sm:$0xff]
    %v248 = vld [vmem:[#allocation6 + $0x60] sm:$0xff]
    %v249 = vld [vmem:[#allocation6 + $0x68] sm:$0xff]
    %v250 = vld [vmem:[#allocation6 + $0x70] sm:$0xff]
    %v251 = vld [vmem:[#allocation6 + $0x78] sm:$0xff]
    %v252 = vld [vmem:[#allocation9 + $0x6] sm:$0x1]
    %v254 = vperm.slane %v252, 0
    %256 = vmatpush.msra.mxu0 %v251
    %257 = vmatpush.msra.mxu0 %v250
    %258 = vmatpush.msra.mxu0 %v249
    %259 = vmatpush.msra.mxu0 %v248
    %260 = vmatpush.msra.mxu0 %v247
    %261 = vmatpush.msra.mxu0 %v246
    %262 = vmatpush.msra.mxu0 %v245
    %263 = vmatpush.msra.mxu0 %v244
    %264 = vmatpush.msra.mxu0 %v243
    %265 = vmatpush.msra.mxu0 %v242
    %266 = vmatpush.msra.mxu0 %v241
    %267 = vmatpush.msra.mxu0 %v240
    %268 = vmatpush.msra.mxu0 %v239
    %269 = vmatpush.msra.mxu0 %v238
    %270 = vmatpush.msra.mxu0 %v237
    %271 = vmatpush.msra.mxu0 %v236
    %272 = vmatmul.f32.gmra.mxu0 %v235
    %v273 = vpop.f32.mrf.mxu0
    %v274 = vadd.f32 %v254, %v273
    %275 = vdwg.mxu0
    %v276 = vld [vmem:[#allocation9 + $0x7] sm:$0x1]
    %v277 = vld [vmem:[#allocation9 + $0x8] sm:$0x1]
    %v278 = vld [vmem:[#allocation9 + $0x9] sm:$0x1]
    %v279 = vld [vmem:[#allocation9 + $0xa] sm:$0x1]
    %v280 = vld [vmem:[#allocation9 + $0xb] sm:$0x1]
    %v281 = vld [vmem:[#allocation9 + $0xc] sm:$0x1]
    %v282 = vmul.f32 %v274, %v274
    %v284 = vperm.slane %v280, 0
    %v286 = vmul.f32 %v274, %v284
    %287 = vadd.xlane.f32.xlu0 %v286
    %v288 = vpop.xlane.xlu0 %287
    %v290 = vperm.slane %v281, 0
    %v292 = vmul.f32 %v274, %v290
    %293 = vadd.xlane.f32.xlu0 %v292
    %v294 = vpop.xlane.xlu0 %293
    %v295 = vmul.f32 %v282, %v284
    %296 = vadd.xlane.f32.xlu0 %v295
    %v297 = vpop.xlane.xlu0 %296
    %v298 = vmul.f32 %v282, %v290
    %299 = vadd.xlane.f32.xlu0 %v298
    %v300 = vpop.xlane.xlu0 %299
    %v301 = vmul.f32 %v288, %v288
    %v302 = vsub.f32 %v297, %v301
    %v303 = vadd.f32 %v302, 1e-05
    %v304 = vrsqrt.pop %v303
    %v305 = vmul.f32 %v304, %v303
    %v306 = vmul.f32 %v305, %v304
    %v307 = vmul.f32 0.5, %v306
    %v308 = vsub.f32 1.5, %v307
    %v309 = vmul.f32 %v304, %v308
    %vm310 = vweird.f32 %v303
    %vm311 = vweird.f32 %v304
    %vm312 = vmor %vm310, %vm311
    %v313 = vsel %vm312, %v304, %v309
    %v314 = vmul.f32 %v294, %v294
    %v315 = vsub.f32 %v300, %v314
    %v316 = vadd.f32 %v315, 1e-05
    %v317 = vrsqrt.pop %v316
    %v318 = vmul.f32 %v317, %v316
    %v319 = vmul.f32 %v318, %v317
    %v320 = vmul.f32 0.5, %v319
    %v321 = vsub.f32 1.5, %v320
    %v322 = vmul.f32 %v317, %v321
    %vm323 = vweird.f32 %v316
    %vm324 = vweird.f32 %v317
    %vm325 = vmor %vm323, %vm324
    %v326 = vsel %vm325, %v317, %v322
    %v328 = vperm.slane %v278, 0
    %v330 = vmul.f32 %v328, %v288
    %v332 = vperm.slane %v279, 0
    %v334 = vmul.f32 %v332, %v294
    %v335 = vadd.f32 %v330, %v334
    %v336 = vmul.f32 %v328, %v313
    %v337 = vmul.f32 %v332, %v326
    %v338 = vadd.f32 %v336, %v337
    %v339 = vsub.f32 %v274, %v335
    %v340 = vmul.f32 %v339, %v338
    %v342 = vperm.slane %v276, 0
    %v344 = vmul.f32 %v340, %v342
    %v346 = vperm.slane %v277, 0
    %v348 = vadd.f32 %v344, %v346
    %v349 = vmax.f32 %v348, 0.0
    %v350 = vld [vmem:[#allocation7] sm:$0xff]
    %v351 = vld [vmem:[#allocation7 + $0x8] sm:$0xff]
    %v352 = vld [vmem:[#allocation7 + $0x10] sm:$0xff]
    %v353 = vld [vmem:[#allocation7 + $0x18] sm:$0xff]
    %v354 = vld [vmem:[#allocation7 + $0x20] sm:$0xff]
    %v355 = vld [vmem:[#allocation7 + $0x28] sm:$0xff]
    %v356 = vld [vmem:[#allocation7 + $0x30] sm:$0xff]
    %v357 = vld [vmem:[#allocation7 + $0x38] sm:$0xff]
    %v358 = vld [vmem:[#allocation7 + $0x40] sm:$0xff]
    %v359 = vld [vmem:[#allocation7 + $0x48] sm:$0xff]
    %v360 = vld [vmem:[#allocation7 + $0x50] sm:$0xff]
    %v361 = vld [vmem:[#allocation7 + $0x58] sm:$0xff]
    %v362 = vld [vmem:[#allocation7 + $0x60] sm:$0xff]
    %v363 = vld [vmem:[#allocation7 + $0x68] sm:$0xff]
    %v364 = vld [vmem:[#allocation7 + $0x70] sm:$0xff]
    %v365 = vld [vmem:[#allocation7 + $0x78] sm:$0xff]
    %v366 = vld [vmem:[#allocation9 + $0xd] sm:$0x1]
    %v368 = vperm.slane %v366, 0
    %370 = vmatpush.msra.mxu0 %v365
    %371 = vmatpush.msra.mxu0 %v364
    %372 = vmatpush.msra.mxu0 %v363
    %373 = vmatpush.msra.mxu0 %v362
    %374 = vmatpush.msra.mxu0 %v361
    %375 = vmatpush.msra.mxu0 %v360
    %376 = vmatpush.msra.mxu0 %v359
    %377 = vmatpush.msra.mxu0 %v358
    %378 = vmatpush.msra.mxu0 %v357
    %379 = vmatpush.msra.mxu0 %v356
    %380 = vmatpush.msra.mxu0 %v355
    %381 = vmatpush.msra.mxu0 %v354
    %382 = vmatpush.msra.mxu0 %v353
    %383 = vmatpush.msra.mxu0 %v352
    %384 = vmatpush.msra.mxu0 %v351
    %385 = vmatpush.msra.mxu0 %v350
    %386 = vmatmul.f32.gmra.mxu0 %v349
    %v387 = vpop.f32.mrf.mxu0
    %v388 = vadd.f32 %v368, %v387
    %389 = vdwg.mxu0
    %390 = vst [vmem:[%s6] sm:$0xff] %v388
    // Predicated region
    $region46: #{improved_actor_critic_forward.1} parent=1 // pred_check
      _
    $region47: #{improved_actor_critic_forward.1} parent=1 // pred_check_branch
      %392 = sbr.rel (0) target = $region49
    $region48: #{improved_actor_critic_forward.1} parent=1 // pred_region
      _
    $region49: #{improved_actor_critic_forward.1} parent=1 // pred_fallthru
      _
    // Predicated region
    $region50: #{improved_actor_critic_forward.1} parent=1 // pred_check
      _
    $region51: #{improved_actor_critic_forward.1} parent=1 // pred_check_branch
      %394 = sbr.rel (0) target = $region53
    $region52: #{improved_actor_critic_forward.1} parent=1 // pred_region
      _
    $region53: #{improved_actor_critic_forward.1} parent=1 // pred_fallthru
      _
    %395 = vsyncpa [#allocation3], 1
    %396 = vsyncpa [#allocation5], 1
    %397 = vsyncpa [#allocation8], 1

</llo_original>
